<compile_context>
chip_gen: v5e
topology: v5e:2x2
jax: 0.10.0
libtpu: 0.0.40
codegen_flags: <defaults>
</compile_context>

<pallas_src>
import jax
import jax.numpy as jnp
from jax.experimental import pallas as pl
from jax.experimental.pallas import tpu as pltpu

NUM_EXPERTS_TOTAL = 8   # module instantiates 8 experts
NUM_EXPERTS_USED = 4    # forward() only sums experts[0:4]
FF_MULT = 4


def _round_up(x, m):
    return ((x + m - 1) // m) * m


def _gelu_exact(x):
    # PyTorch nn.GELU() default (approximate='none'): 0.5*x*(1+erf(x/sqrt(2)))
    return 0.5 * x * (1.0 + jax.lax.erf(x * 0.7071067811865476))


def _vmem_capacity_bytes():
    try:
        return int(pltpu.get_tpu_info().vmem_capacity_bytes)
    except Exception:
        return 64 * 1024 * 1024      # conservative (v7x per-core) fallback


# ----------------------------------------------------------------------------
# Single-buffering capability probe (pipeline_mode=pl.Buffered(1)).
# Constant-index operands gain nothing from double buffering; dropping to one
# buffer halves their VMEM footprint.  Probe once so an unsupported jax build
# degrades gracefully instead of failing the real kernel.
# ----------------------------------------------------------------------------
_BUFFERED1_OK = None


def _buffered1_supported():
    global _BUFFERED1_OK
    if _BUFFERED1_OK is None:
        def _copy(a_ref, o_ref):
            o_ref[...] = a_ref[...]
        try:
            spec = pl.BlockSpec((8, 128), lambda i: (0, 0),
                                pipeline_mode=pl.Buffered(1))
            fn = pl.pallas_call(
                _copy,
                out_shape=jax.ShapeDtypeStruct((8, 128), jnp.float32),
                grid=(1,),
                in_specs=[spec],
                out_specs=pl.BlockSpec((8, 128), lambda i: (0, 0)),
            )
            x0 = jnp.arange(8 * 128, dtype=jnp.float32).reshape(8, 128)
            _BUFFERED1_OK = bool(jnp.allclose(jax.block_until_ready(fn(x0)), x0))
        except Exception:
            _BUFFERED1_OK = False
    return _BUFFERED1_OK


def _resident_spec(shape, index_map):
    if _buffered1_supported():
        return pl.BlockSpec(shape, index_map, pipeline_mode=pl.Buffered(1))
    return pl.BlockSpec(shape, index_map)


# ----------------------------------------------------------------------------
# Kernels
# ----------------------------------------------------------------------------
def moe_kernel_resident(x_ref, w1_ref, b1_ref, w2_ref, b2_ref, o_ref):
    """One fused-MLP pass per (tm, Hp) token tile; fused weights VMEM-resident."""
    h = jnp.dot(x_ref[...], w1_ref[...], preferred_element_type=jnp.float32)
    h = _gelu_exact(h + b1_ref[...])
    y = jnp.dot(h.astype(w2_ref.dtype), w2_ref[...],
                preferred_element_type=jnp.float32)
    o_ref[...] = (y + b2_ref[...]).astype(o_ref.dtype)


def moe_kernel_ffchunk(x_ref, w1_ref, b1_ref, w2_ref, b2_ref, o_ref, acc_ref):
    """FF-chunked variant: accumulate over the (last, "arbitrary") FF axis."""
    k = pl.program_id(1)

    @pl.when(k == 0)
    def _():
        acc_ref[...] = jnp.zeros_like(acc_ref)

    h = jnp.dot(x_ref[...], w1_ref[...], preferred_element_type=jnp.float32)
    h = _gelu_exact(h + b1_ref[...])
    acc_ref[...] += jnp.dot(h.astype(w2_ref.dtype), w2_ref[...],
                            preferred_element_type=jnp.float32)

    @pl.when(k == pl.num_programs(1) - 1)
    def _():
        o_ref[...] = (acc_ref[...] + b2_ref[...]).astype(o_ref.dtype)


# ----------------------------------------------------------------------------
# Host-side: weight preparation (hoisted out of the per-call path) + forward
# ----------------------------------------------------------------------------
def prepare_weights(w1, b1, w2, b2, *, compute_dtype=jnp.float32,
                    force_chunked=False, max_ff_chunk=2048):
    """Fuse the 4 used experts into one wide MLP, pad to TPU layout, pick variant.

    Call once per weight update; returns (params, meta) consumed by
    moe_block_forward.  Fusion is exact: expert FF blocks occupy disjoint
    columns/rows and GELU is elementwise (only f32 summation order differs).
    """
    E = NUM_EXPERTS_USED
    H, FF = w1.shape[-2], w1.shape[-1]
    Eff = E * FF

    w1f = jnp.transpose(w1[:E], (1, 0, 2)).reshape(H, Eff)     # (H, 4FF)
    b1f = b1[:E].reshape(1, Eff)
    w2f = w2[:E].reshape(Eff, H)                                # (4FF, H)
    b2s = jnp.sum(b2[:E], axis=0).reshape(1, H)

    Hp = _round_up(H, 128)
    FFp = _round_up(Eff, 128)

    budget = int(0.85 * _vmem_capacity_bytes())
    wbytes = jnp.dtype(compute_dtype).itemsize
    wbuf = 1 if _buffered1_supported() else 2     # resident-weight buffer count
    tm_nom = 512                                  # nominal token tile for sizing

    # Resident-weight VMEM estimate: weights+biases (wbuf x), double-buffered
    # x/out tiles, (tm, FFp) f32 GELU intermediate.
    resident_need = (wbuf * (2 * Hp * FFp + FFp + Hp) * wbytes
                     + 2 * 2 * tm_nom * Hp * 4
                     + tm_nom * FFp * 4)
    use_chunked = force_chunked or resident_need > budget

    tf = FFp
    if use_chunked:
        tf = min(max_ff_chunk, FFp)
        # Shrink the FF chunk until double-buffered W1/W2 chunks + GELU tile
        # + x/out tiles + accumulator fit the scoped-VMEM budget.
        while tf > 128 and (2 * 2 * Hp * tf * wbytes
                            + tm_nom * tf * 4
                            + (2 * 2 + 1) * tm_nom * Hp * 4) > budget:
            tf = max(128, _round_up(tf // 2, 128))
        FFp = _round_up(Eff, tf)

    # Zero padding is exact: padded rows/cols contribute nothing and padded
    # outputs are sliced off by the caller.
    w1p = jnp.pad(w1f, ((0, Hp - H), (0, FFp - Eff))).astype(compute_dtype)
    w2p = jnp.pad(w2f, ((0, FFp - Eff), (0, Hp - H))).astype(compute_dtype)
    b1p = jnp.pad(b1f, ((0, 0), (0, FFp - Eff))).astype(jnp.float32)
    b2p = jnp.pad(b2s, ((0, 0), (0, Hp - H))).astype(jnp.float32)

    meta = dict(H=H, Hp=Hp, Eff=Eff, FFp=FFp, tf=tf,
                use_chunked=use_chunked, vmem_limit=budget)
    return (w1p, b1p, w2p, b2p), meta


def _choose_tm(M):
    # Big tiles amortize the ~0.35us/grid-step overhead and feed the 256x256
    # MXU; prefer an EVEN tile count so the "parallel" M axis splits evenly
    # across v7x's two TensorCores (neutral on single-TC v5e/v6e), and never
    # pad M up just to even the grid (that only wastes HBM/MXU work).
    if M < 256:
        return _round_up(max(M, 8), 8)
    cands = [t for t in (512, 256) if t <= M]
    for t in cands:
        if M % t == 0 and (M // t) % 2 == 0:
            return t
    for t in cands:
        if M % t == 0:
            return t
    return 256


def moe_block_forward(x, params, meta):
    """(B, S, H) -> (B, S, H): sum of experts[0:4] applied to every token."""
    w1p, b1p, w2p, b2p = params
    B, S, H = x.shape
    Hp, FFp, tf = meta["Hp"], meta["FFp"], meta["tf"]
    M = B * S

    tm = _choose_tm(M)
    ntiles = -(-M // tm)
    Mp = ntiles * tm

    x2 = x.reshape(M, H)
    if Mp == M and Hp == H:
        xp = x2                                   # skip the pad round-trip
    else:
        xp = jnp.pad(x2, ((0, Mp - M), (0, Hp - H)))
    xp = xp.astype(w1p.dtype)

    wbytes = jnp.dtype(w1p.dtype).itemsize
    xbytes = jnp.dtype(xp.dtype).itemsize
    obytes = jnp.dtype(x.dtype).itemsize
    cparams = dict(vmem_limit_bytes=meta["vmem_limit"])

    if not meta["use_chunked"]:
        cost = pl.CostEstimate(
            flops=4 * Mp * Hp * FFp,
            transcendentals=Mp * FFp,
            bytes_accessed=(Mp * Hp * (xbytes + obytes)
                            + 2 * Hp * FFp * wbytes + (FFp + Hp) * 4))
        out = pl.pallas_call(
            moe_kernel_resident,
            out_shape=jax.ShapeDtypeStruct((Mp, Hp), x.dtype),
            grid=(ntiles,),
            in_specs=[
                pl.BlockSpec((tm, Hp), lambda i: (i, 0)),     # x (pipelined)
                _resident_spec((Hp, FFp), lambda i: (0, 0)),  # fused W1 (resident)
                _resident_spec((1, FFp), lambda i: (0, 0)),   # fused b1
                _resident_spec((FFp, Hp), lambda i: (0, 0)),  # fused W2 (resident)
                _resident_spec((1, Hp), lambda i: (0, 0)),    # summed b2
            ],
            out_specs=pl.BlockSpec((tm, Hp), lambda i: (i, 0)),
            compiler_params=pltpu.CompilerParams(
                dimension_semantics=("parallel",), **cparams),
            cost_estimate=cost,
        )(xp, w1p, b1p, w2p, b2p)
    else:
        nk = FFp // tf
        cost = pl.CostEstimate(
            flops=4 * Mp * Hp * FFp,
            transcendentals=Mp * FFp,
            bytes_accessed=(Mp * Hp * (xbytes + obytes)
                            + ntiles * (2 * Hp * FFp * wbytes + FFp * 4)
                            + Hp * 4))
        out = pl.pallas_call(
            moe_kernel_ffchunk,
            out_shape=jax.ShapeDtypeStruct((Mp, Hp), x.dtype),
            grid=(ntiles, nk),                               # FF (reduction) last
            in_specs=[
                pl.BlockSpec((tm, Hp), lambda i, k: (i, 0)),  # x tile
                pl.BlockSpec((Hp, tf), lambda i, k: (0, k)),  # W1 chunk
                pl.BlockSpec((1, tf), lambda i, k: (0, k)),   # b1 chunk
                pl.BlockSpec((tf, Hp), lambda i, k: (k, 0)),  # W2 chunk
                _resident_spec((1, Hp), lambda i, k: (0, 0)), # summed b2
            ],
            out_specs=pl.BlockSpec((tm, Hp), lambda i, k: (i, 0)),
            scratch_shapes=[pltpu.VMEM((tm, Hp), jnp.float32)],
            compiler_params=pltpu.CompilerParams(
                dimension_semantics=("parallel", "arbitrary"), **cparams),
            cost_estimate=cost,
        )(xp, w1p, b1p, w2p, b2p)

    return out[:M, :H].reshape(B, S, H)


def moe_block(x, w1, b1, w2, b2):
    """Convenience one-shot API (prep + forward).  For repeated calls with the
    same weights, call prepare_weights once and reuse (params, meta)."""
    params, meta = prepare_weights(w1, b1, w2, b2)
    return moe_block_forward(x, params, meta)


def moe_ref(x, w1, b1, w2, b2):
    # Pure-JAX reference mirroring the PyTorch module literally:
    # per-expert MLP, summed over the first 4 experts.
    B, S, H = x.shape
    x2 = x.reshape(-1, H)
    out = jnp.zeros_like(x2)
    for e in range(NUM_EXPERTS_USED):
        h = _gelu_exact(x2 @ w1[e] + b1[e, 0])
        out = out + (h @ w2[e] + b2[e, 0])
    return out.reshape(B, S, H)


if __name__ == "__main__":
    H = 32
    FF = H * FF_MULT
    B, S = 2, 8

    key = jax.random.PRNGKey(0)
    kx, k1, k2, k3, k4 = jax.random.split(key, 5)

    x = jax.random.normal(kx, (B, S, H), dtype=jnp.float32)

    # Deterministic init mimicking nn.Linear: U(-1/sqrt(fan_in), 1/sqrt(fan_in)).
    bound1 = 1.0 / (H ** 0.5)
    bound2 = 1.0 / (FF ** 0.5)
    w1 = jax.random.uniform(k1, (NUM_EXPERTS_TOTAL, H, FF), jnp.float32, -bound1, bound1)
    b1 = jax.random.uniform(k2, (NUM_EXPERTS_TOTAL, 1, FF), jnp.float32, -bound1, bound1)
    w2 = jax.random.uniform(k3, (NUM_EXPERTS_TOTAL, FF, H), jnp.float32, -bound2, bound2)
    b2 = jax.random.uniform(k4, (NUM_EXPERTS_TOTAL, 1, H), jnp.float32, -bound2, bound2)

    ref = moe_ref(x, w1, b1, w2, b2)

    # --- Variant 1: resident fused weights (what small/medium H uses) --------
    params, meta = prepare_weights(w1, b1, w2, b2)          # hoisted weight prep
    fwd = jax.jit(lambda xx, pp: moe_block_forward(xx, pp, meta))
    out = jax.block_until_ready(fwd(x, params))
    assert out.shape == x.shape and out.dtype == x.dtype
    assert jnp.allclose(out, ref, atol=2e-5, rtol=2e-5), "resident variant mismatch"

    # --- Variant 2: FF-chunked (the v7x / large-H path), forced + small tf so
    # the multi-chunk accumulation is actually exercised ----------------------
    params_c, meta_c = prepare_weights(w1, b1, w2, b2,
                                       force_chunked=True, max_ff_chunk=128)
    fwd_c = jax.jit(lambda xx, pp: moe_block_forward(xx, pp, meta_c))
    out_c = jax.block_until_ready(fwd_c(x, params_c))
    assert out_c.shape == x.shape and out_c.dtype == x.dtype
    assert jnp.allclose(out_c, ref, atol=2e-5, rtol=2e-5), "chunked variant mismatch"

    print("KERNEL_OK")
</pallas_src>

<mosaic_0001>
module attributes {stable_mosaic.version = 11 : i64} {
  func.func @_copy(%arg0: i32, %arg1: memref<8x128xf32, #tpu.memory_space<vmem>>, %arg2: memref<8x128xf32, #tpu.memory_space<vmem>>) attributes {dimension_semantics = [#tpu.dimension_semantics<arbitrary>], iteration_bounds = array<i64: 1>, scalar_prefetch = 0 : i64, scratch_operands = 0 : i64, tpu.core_type = #tpu.core_type<tc>, window_params = [{pipeline_mode = #tpu.pipeline_mode<synchronous>, transform_indices = @transform_0, window_bounds = array<i64: 8, 128>}, {pipeline_mode = #tpu.pipeline_mode<synchronous>, transform_indices = @transform_1, window_bounds = array<i64: 8, 128>}]} {
    %c0 = arith.constant 0 : index
    %c0_0 = arith.constant 0 : index
    %0 = vector.load %arg1[%c0, %c0_0] : memref<8x128xf32, #tpu.memory_space<vmem>>, vector<8x128xf32>
    %c0_1 = arith.constant 0 : index
    %c0_2 = arith.constant 0 : index
    %1 = vector.load %arg2[%c0_1, %c0_2] : memref<8x128xf32, #tpu.memory_space<vmem>>, vector<8x128xf32>
    tpu.vector_store %arg2[%c0_1, %c0_2], %0 {strides = array<i32>} : memref<8x128xf32, #tpu.memory_space<vmem>>, vector<8x128xf32>,
    return
  }
  func.func @transform_0(%arg0: i32) -> (i32, i32) {
    %c0_i32 = arith.constant 0 : i32
    %c0_i32_0 = arith.constant 0 : i32
    %c0_i32_1 = arith.constant 0 : i32
    return %c0_i32, %c0_i32_0 : i32, i32
  }
  func.func @transform_1(%arg0: i32) -> (i32, i32) {
    %c0_i32 = arith.constant 0 : i32
    %c0_i32_0 = arith.constant 0 : i32
    %c0_i32_1 = arith.constant 0 : i32
    return %c0_i32, %c0_i32_0 : i32, i32
  }
}

module attributes {stable_mosaic.version = 11 : i64} {
  func.func @moe_kernel_resident(%arg0: i32, %arg1: memref<16x128xf32, #tpu.memory_space<vmem>>, %arg2: memref<128x512xf32, #tpu.memory_space<vmem>>, %arg3: memref<1x512xf32, #tpu.memory_space<vmem>>, %arg4: memref<512x128xf32, #tpu.memory_space<vmem>>, %arg5: memref<1x128xf32, #tpu.memory_space<vmem>>, %arg6: memref<16x128xf32, #tpu.memory_space<vmem>>) attributes {dimension_semantics = [#tpu.dimension_semantics<parallel>], iteration_bounds = array<i64: 1>, scalar_prefetch = 0 : i64, scratch_operands = 0 : i64, tpu.core_type = #tpu.core_type<tc>, window_params = [{transform_indices = @transform_0, window_bounds = array<i64: 16, 128>}, {pipeline_mode = #tpu.pipeline_mode<synchronous>, transform_indices = @transform_1, window_bounds = array<i64: 128, 512>}, {pipeline_mode = #tpu.pipeline_mode<synchronous>, transform_indices = @transform_2, window_bounds = array<i64: 1, 512>}, {pipeline_mode = #tpu.pipeline_mode<synchronous>, transform_indices = @transform_3, window_bounds = array<i64: 512, 128>}, {pipeline_mode = #tpu.pipeline_mode<synchronous>, transform_indices = @transform_4, window_bounds = array<i64: 1, 128>}, {transform_indices = @transform_5, window_bounds = array<i64: 16, 128>}]} {
    %c0 = arith.constant 0 : index
    %c0_0 = arith.constant 0 : index
    %0 = vector.load %arg1[%c0, %c0_0] : memref<16x128xf32, #tpu.memory_space<vmem>>, vector<16x128xf32>
    %c0_1 = arith.constant 0 : index
    %c0_2 = arith.constant 0 : index
    %1 = vector.load %arg2[%c0_1, %c0_2] : memref<128x512xf32, #tpu.memory_space<vmem>>, vector<128x512xf32>
    %cst = arith.constant dense<0.000000e+00> : vector<16x512xf32>
    %2 = tpu.matmul %0, %1, %cst {dimension_numbers = #tpu.dot_dimension_numbers<[1], [0], [0], [1], [0, 0, 1, 1], [], []>} : vector<16x128xf32>, vector<128x512xf32>, vector<16x512xf32> -> vector<16x512xf32>
    %c0_3 = arith.constant 0 : index
    %c0_4 = arith.constant 0 : index
    %3 = vector.load %arg3[%c0_3, %c0_4] : memref<1x512xf32, #tpu.memory_space<vmem>>, vector<1x512xf32>
    %4 = vector.broadcast %3 : vector<1x512xf32> to vector<16x512xf32>
    %5 = arith.addf %2, %4 : vector<16x512xf32>
    %cst_5 = arith.constant 5.000000e-01 : f32
    %6 = vector.broadcast %cst_5 : f32 to vector<16x512xf32>
    %7 = arith.mulf %6, %5 : vector<16x512xf32>
    %cst_6 = arith.constant 0.707106769 : f32
    %8 = vector.broadcast %cst_6 : f32 to vector<16x512xf32>
    %9 = arith.mulf %5, %8 : vector<16x512xf32>
    %10 = math.erf %9 : vector<16x512xf32>
    %cst_7 = arith.constant 1.000000e+00 : f32
    %11 = vector.broadcast %cst_7 : f32 to vector<16x512xf32>
    %12 = arith.addf %11, %10 : vector<16x512xf32>
    %13 = arith.mulf %7, %12 : vector<16x512xf32>
    %c0_8 = arith.constant 0 : index
    %c0_9 = arith.constant 0 : index
    %14 = vector.load %arg4[%c0_8, %c0_9] : memref<512x128xf32, #tpu.memory_space<vmem>>, vector<512x128xf32>
    %cst_10 = arith.constant dense<0.000000e+00> : vector<16x128xf32>
    %15 = tpu.matmul %13, %14, %cst_10 {dimension_numbers = #tpu.dot_dimension_numbers<[1], [0], [0], [1], [0, 0, 1, 1], [], []>} : vector<16x512xf32>, vector<512x128xf32>, vector<16x128xf32> -> vector<16x128xf32>
    %c0_11 = arith.constant 0 : index
    %c0_12 = arith.constant 0 : index
    %16 = vector.load %arg5[%c0_11, %c0_12] : memref<1x128xf32, #tpu.memory_space<vmem>>, vector<1x128xf32>
    %17 = vector.broadcast %16 : vector<1x128xf32> to vector<16x128xf32>
    %18 = arith.addf %15, %17 : vector<16x128xf32>
    %c0_13 = arith.constant 0 : index
    %c0_14 = arith.constant 0 : index
    %19 = vector.load %arg6[%c0_13, %c0_14] : memref<16x128xf32, #tpu.memory_space<vmem>>, vector<16x128xf32>
    tpu.vector_store %arg6[%c0_13, %c0_14], %18 {strides = array<i32>} : memref<16x128xf32, #tpu.memory_space<vmem>>, vector<16x128xf32>,
    return
  }
  func.func @transform_0(%arg0: i32) -> (i32, i32) {
    %c0_i32 = arith.constant 0 : i32
    %c0_i32_0 = arith.constant 0 : i32
    return %arg0, %c0_i32 : i32, i32
  }
  func.func @transform_1(%arg0: i32) -> (i32, i32) {
    %c0_i32 = arith.constant 0 : i32
    %c0_i32_0 = arith.constant 0 : i32
    %c0_i32_1 = arith.constant 0 : i32
    return %c0_i32, %c0_i32_0 : i32, i32
  }
  func.func @transform_2(%arg0: i32) -> (i32, i32) {
    %c0_i32 = arith.constant 0 : i32
    %c0_i32_0 = arith.constant 0 : i32
    %c0_i32_1 = arith.constant 0 : i32
    return %c0_i32, %c0_i32_0 : i32, i32
  }
  func.func @transform_3(%arg0: i32) -> (i32, i32) {
    %c0_i32 = arith.constant 0 : i32
    %c0_i32_0 = arith.constant 0 : i32
    %c0_i32_1 = arith.constant 0 : i32
    return %c0_i32, %c0_i32_0 : i32, i32
  }
  func.func @transform_4(%arg0: i32) -> (i32, i32) {
    %c0_i32 = arith.constant 0 : i32
    %c0_i32_0 = arith.constant 0 : i32
    %c0_i32_1 = arith.constant 0 : i32
    return %c0_i32, %c0_i32_0 : i32, i32
  }
  func.func @transform_5(%arg0: i32) -> (i32, i32) {
    %c0_i32 = arith.constant 0 : i32
    %c0_i32_0 = arith.constant 0 : i32
    return %arg0, %c0_i32 : i32, i32
  }
}

</mosaic_0001>

<llo_original>
// kernel: tpu_custom_call.1
$region0: #{tpu_custom_call.1}
  #allocation0 [shape = 'u32[]', space=smem, size = 0x4, offset = 0x4, fixed_abs, tag = 'smem constant byte address 0x4 - core index']
  #allocation1 [shape = 'u32[72,128]{1,0:T(1,128)}', space=vmem, size = 0x9000, scoped, tag = 'internal scratch']
  %s0 = inlined_call_operand.hbm [shape: f32[8,128], index: 0, kind: input, shape index: {}]
  %s1 = inlined_call_operand.hbm [shape: f32[8,128], index: 1, kind: output, shape index: {}]
  %s2 = sld [smem:[#allocation0]]
  $region18: #{tpu_custom_call.1} parent=0
    _
  %s4 = ssub.s32 1, %s2
  %s5 = scalar_select 0, %s4, %s2
  $region1: #{tpu_custom_call.1} parent=0
    #allocation2 [shape = 'u8[4096]{0}', space=vmem, size = 0x1000, scoped, tag = 'input window, operand 0, single buffered']
    #allocation3 [shape = 's32[1]{0}', space=sflag, size = 0x4, scoped, tag = 'scoped memory for tpu_custom_call.1']
    #allocation4 [shape = 's32[1]{0}', space=sflag, size = 0x4, scoped, tag = 'scoped memory for tpu_custom_call.1']
    #allocation5 [shape = 'u8[4096]{0}', space=vmem, size = 0x1000, scoped, tag = 'output window, operand 0, single buffered']
    %6 = vsyncpa [#allocation3], 0
    %7 = vsyncpa [#allocation4], 0
    // Predicated region
    $region2: #{tpu_custom_call.1} parent=1 // pred_check
      _
    $region3: #{tpu_custom_call.1} parent=1 // pred_check_branch
      %9 = sbr.rel (0) target = $region5
    $region4: #{tpu_custom_call.1} parent=1 // pred_region
      %11 = vsyncadd [#allocation3], 0
      %s13 = sshll.u32 %s0, 4
      %s14 = int_to_ptr.hbm [resolvable:$true] %s13
      %s15 = sshll.u32 [#allocation2], 4
      %s16 = int_to_ptr.vmem [resolvable:$true] %s15
      %18 = dma.hbm_to_vmem [thread:$0]  %s14, 128, %s16, [#allocation3]
    $region5: #{tpu_custom_call.1} parent=1 // pred_fallthru
      _
    // Predicated region
    $region6: #{tpu_custom_call.1} parent=1 // pred_check
      _
    $region7: #{tpu_custom_call.1} parent=1 // pred_check_branch
      %20 = sbr.rel (0) target = $region9
    $region8: #{tpu_custom_call.1} parent=1 // pred_region
      %22 = dma.done [#allocation3], 128
    $region9: #{tpu_custom_call.1} parent=1 // pred_fallthru
      _
    %v23 = vld [vmem:[#allocation2] sm:$0xff]
    %24 = vst [vmem:[#allocation5] sm:$0xff] %v23
    // Predicated region
    $region10: #{tpu_custom_call.1} parent=1 // pred_check
      _
    $region11: #{tpu_custom_call.1} parent=1 // pred_check_branch
      %26 = sbr.rel (0) target = $region13
    $region12: #{tpu_custom_call.1} parent=1 // pred_region
      %28 = vsyncadd [#allocation4], 0
      %s30 = sshll.u32 [#allocation5], 4
      %s31 = int_to_ptr.vmem [resolvable:$true] %s30
      %s32 = sshll.u32 %s1, 4
      %s33 = int_to_ptr.hbm [resolvable:$true] %s32
      %35 = dma.vmem_to_hbm [thread:$0]  %s31, 128, %s33, [#allocation4]
    $region13: #{tpu_custom_call.1} parent=1 // pred_fallthru
      _
    // Predicated region
    $region14: #{tpu_custom_call.1} parent=1 // pred_check
      _
    $region15: #{tpu_custom_call.1} parent=1 // pred_check_branch
      %37 = sbr.rel (0) target = $region17
    $region16: #{tpu_custom_call.1} parent=1 // pred_region
      %39 = dma.done [#allocation4], 128
    $region17: #{tpu_custom_call.1} parent=1 // pred_fallthru
      _
    %40 = vsyncpa [#allocation3], 1
    %41 = vsyncpa [#allocation4], 1

// kernel: _lambda_.1
$region0: #{_lambda_.1}
  #allocation0 [shape = 'u32[]', space=smem, size = 0x4, offset = 0x4, fixed_abs, tag = 'smem constant byte address 0x4 - core index']
  #allocation1 [shape = 'u32[72,128]{1,0:T(1,128)}', space=vmem, size = 0x9000, scoped, tag = 'internal scratch']
  %s0 = inlined_call_operand.vmem [shape: f32[16,128], index: 0, kind: input, shape index: {}]
  %s1 = inlined_call_operand.hbm [shape: f32[128,512], index: 1, kind: input, shape index: {}]
  %s2 = inlined_call_operand.vmem [shape: f32[1,512], index: 2, kind: input, shape index: {}]
  %s3 = inlined_call_operand.hbm [shape: f32[512,128], index: 3, kind: input, shape index: {}]
  %s4 = inlined_call_operand.vmem [shape: f32[1,128], index: 4, kind: input, shape index: {}]
  %s5 = inlined_call_operand.vmem [shape: f32[16,128], index: 5, kind: output, shape index: {}]
  %s6 = sld [smem:[#allocation0]]
  $region38: #{_lambda_.1} parent=0
    _
  %s8 = ssub.s32 1, %s6
  %s9 = scalar_select 0, %s8, %s6
  $region1: #{_lambda_.1} parent=0
    #allocation2 [shape = 'u8[262144]{0}', space=vmem, size = 0x40000, scoped, tag = 'input window, operand 1, single buffered']
    #allocation3 [shape = 's32[1]{0}', space=sflag, size = 0x4, scoped, tag = 'scoped memory for _lambda_.1']
    #allocation4 [shape = 'u8[262144]{0}', space=vmem, size = 0x40000, scoped, tag = 'input window, operand 3, single buffered']
    #allocation5 [shape = 's32[1]{0}', space=sflag, size = 0x4, scoped, tag = 'scoped memory for _lambda_.1']
    %10 = vsyncpa [#allocation3], 0
    %11 = vsyncpa [#allocation5], 0
    // Predicated region
    $region2: #{_lambda_.1} parent=1 // pred_check
      _
    $region3: #{_lambda_.1} parent=1 // pred_check_branch
      %13 = sbr.rel (0) target = $region5
    $region4: #{_lambda_.1} parent=1 // pred_region
      _
    $region5: #{_lambda_.1} parent=1 // pred_fallthru
      _
    // Predicated region
    $region6: #{_lambda_.1} parent=1 // pred_check
      _
    $region7: #{_lambda_.1} parent=1 // pred_check_branch
      %15 = sbr.rel (0) target = $region9
    $region8: #{_lambda_.1} parent=1 // pred_region
      %17 = vsyncadd [#allocation3], 0
      %s18 = sshll.u32 %s1, 4
      %s19 = int_to_ptr.hbm [resolvable:$true] %s18
      %s20 = sshll.u32 [#allocation2], 4
      %s21 = int_to_ptr.vmem [resolvable:$true] %s20
      %26 = dma.hbm_to_vmem [thread:$0]  %s19, 8192, %s21, [#allocation3], 512, 512, 32
    $region9: #{_lambda_.1} parent=1 // pred_fallthru
      _
    // Predicated region
    $region10: #{_lambda_.1} parent=1 // pred_check
      _
    $region11: #{_lambda_.1} parent=1 // pred_check_branch
      %28 = sbr.rel (0) target = $region13
    $region12: #{_lambda_.1} parent=1 // pred_region
      _
    $region13: #{_lambda_.1} parent=1 // pred_fallthru
      _
    // Predicated region
    $region14: #{_lambda_.1} parent=1 // pred_check
      _
    $region15: #{_lambda_.1} parent=1 // pred_check_branch
      %30 = sbr.rel (0) target = $region17
    $region16: #{_lambda_.1} parent=1 // pred_region
      %32 = vsyncadd [#allocation5], 0
      %s33 = sshll.u32 %s3, 4
      %s34 = int_to_ptr.hbm [resolvable:$true] %s33
      %s35 = sshll.u32 [#allocation4], 4
      %s36 = int_to_ptr.vmem [resolvable:$true] %s35
      %41 = dma.hbm_to_vmem [thread:$0]  %s34, 8192, %s36, [#allocation5], 128, 128, 8
    $region17: #{_lambda_.1} parent=1 // pred_fallthru
      _
    // Predicated region
    $region18: #{_lambda_.1} parent=1 // pred_check
      _
    $region19: #{_lambda_.1} parent=1 // pred_check_branch
      %43 = sbr.rel (0) target = $region21
    $region20: #{_lambda_.1} parent=1 // pred_region
      _
    $region21: #{_lambda_.1} parent=1 // pred_fallthru
      _
    // Predicated region
    $region22: #{_lambda_.1} parent=1 // pred_check
      _
    $region23: #{_lambda_.1} parent=1 // pred_check_branch
      %45 = sbr.rel (0) target = $region25
    $region24: #{_lambda_.1} parent=1 // pred_region
      %47 = dma.done [#allocation3], 8192
    $region25: #{_lambda_.1} parent=1 // pred_fallthru
      _
    // Predicated region
    $region26: #{_lambda_.1} parent=1 // pred_check
      _
    $region27: #{_lambda_.1} parent=1 // pred_check_branch
      %49 = sbr.rel (0) target = $region29
    $region28: #{_lambda_.1} parent=1 // pred_region
      %51 = dma.done [#allocation5], 8192
    $region29: #{_lambda_.1} parent=1 // pred_fallthru
      _
    %v52 = vld [vmem:[%s0] sm:$0xff]
    %v53 = vld [vmem:[%s0 + $0x8] sm:$0xff]
    %v54 = vld [vmem:[#allocation2] sm:$0xff]
    %v55 = vld [vmem:[#allocation2 + $0x8] sm:$0xff]
    %v56 = vld [vmem:[#allocation2 + $0x10] sm:$0xff]
    %v57 = vld [vmem:[#allocation2 + $0x18] sm:$0xff]
    %v58 = vld [vmem:[#allocation2 + $0x20] sm:$0xff]
    %v59 = vld [vmem:[#allocation2 + $0x28] sm:$0xff]
    %v60 = vld [vmem:[#allocation2 + $0x30] sm:$0xff]
    %v61 = vld [vmem:[#allocation2 + $0x38] sm:$0xff]
    %v62 = vld [vmem:[#allocation2 + $0x40] sm:$0xff]
    %v63 = vld [vmem:[#allocation2 + $0x48] sm:$0xff]
    %v64 = vld [vmem:[#allocation2 + $0x50] sm:$0xff]
    %v65 = vld [vmem:[#allocation2 + $0x58] sm:$0xff]
    %v66 = vld [vmem:[#allocation2 + $0x60] sm:$0xff]
    %v67 = vld [vmem:[#allocation2 + $0x68] sm:$0xff]
    %v68 = vld [vmem:[#allocation2 + $0x70] sm:$0xff]
    %v69 = vld [vmem:[#allocation2 + $0x78] sm:$0xff]
    %v70 = vld [vmem:[#allocation2 + $0x80] sm:$0xff]
    %v71 = vld [vmem:[#allocation2 + $0x88] sm:$0xff]
    %v72 = vld [vmem:[#allocation2 + $0x90] sm:$0xff]
    %v73 = vld [vmem:[#allocation2 + $0x98] sm:$0xff]
    %v74 = vld [vmem:[#allocation2 + $0xa0] sm:$0xff]
    %v75 = vld [vmem:[#allocation2 + $0xa8] sm:$0xff]
    %v76 = vld [vmem:[#allocation2 + $0xb0] sm:$0xff]
    %v77 = vld [vmem:[#allocation2 + $0xb8] sm:$0xff]
    %v78 = vld [vmem:[#allocation2 + $0xc0] sm:$0xff]
    %v79 = vld [vmem:[#allocation2 + $0xc8] sm:$0xff]
    %v80 = vld [vmem:[#allocation2 + $0xd0] sm:$0xff]
    %v81 = vld [vmem:[#allocation2 + $0xd8] sm:$0xff]
    %v82 = vld [vmem:[#allocation2 + $0xe0] sm:$0xff]
    %v83 = vld [vmem:[#allocation2 + $0xe8] sm:$0xff]
    %v84 = vld [vmem:[#allocation2 + $0xf0] sm:$0xff]
    %v85 = vld [vmem:[#allocation2 + $0xf8] sm:$0xff]
    %v86 = vld [vmem:[#allocation2 + $0x100] sm:$0xff]
    %v87 = vld [vmem:[#allocation2 + $0x108] sm:$0xff]
    %v88 = vld [vmem:[#allocation2 + $0x110] sm:$0xff]
    %v89 = vld [vmem:[#allocation2 + $0x118] sm:$0xff]
    %v90 = vld [vmem:[#allocation2 + $0x120] sm:$0xff]
    %v91 = vld [vmem:[#allocation2 + $0x128] sm:$0xff]
    %v92 = vld [vmem:[#allocation2 + $0x130] sm:$0xff]
    %v93 = vld [vmem:[#allocation2 + $0x138] sm:$0xff]
    %v94 = vld [vmem:[#allocation2 + $0x140] sm:$0xff]
    %v95 = vld [vmem:[#allocation2 + $0x148] sm:$0xff]
    %v96 = vld [vmem:[#allocation2 + $0x150] sm:$0xff]
    %v97 = vld [vmem:[#allocation2 + $0x158] sm:$0xff]
    %v98 = vld [vmem:[#allocation2 + $0x160] sm:$0xff]
    %v99 = vld [vmem:[#allocation2 + $0x168] sm:$0xff]
    %v100 = vld [vmem:[#allocation2 + $0x170] sm:$0xff]
    %v101 = vld [vmem:[#allocation2 + $0x178] sm:$0xff]
    %v102 = vld [vmem:[#allocation2 + $0x180] sm:$0xff]
    %v103 = vld [vmem:[#allocation2 + $0x188] sm:$0xff]
    %v104 = vld [vmem:[#allocation2 + $0x190] sm:$0xff]
    %v105 = vld [vmem:[#allocation2 + $0x198] sm:$0xff]
    %v106 = vld [vmem:[#allocation2 + $0x1a0] sm:$0xff]
    %v107 = vld [vmem:[#allocation2 + $0x1a8] sm:$0xff]
    %v108 = vld [vmem:[#allocation2 + $0x1b0] sm:$0xff]
    %v109 = vld [vmem:[#allocation2 + $0x1b8] sm:$0xff]
    %v110 = vld [vmem:[#allocation2 + $0x1c0] sm:$0xff]
    %v111 = vld [vmem:[#allocation2 + $0x1c8] sm:$0xff]
    %v112 = vld [vmem:[#allocation2 + $0x1d0] sm:$0xff]
    %v113 = vld [vmem:[#allocation2 + $0x1d8] sm:$0xff]
    %v114 = vld [vmem:[#allocation2 + $0x1e0] sm:$0xff]
    %v115 = vld [vmem:[#allocation2 + $0x1e8] sm:$0xff]
    %v116 = vld [vmem:[#allocation2 + $0x1f0] sm:$0xff]
    %v117 = vld [vmem:[#allocation2 + $0x1f8] sm:$0xff]
    %v118 = vld [vmem:[%s2] sm:$0xf]
    %v120 = vperm.slane %v118, 0
    %v121 = vperm.slane %v118, 1
    %v122 = vperm.slane %v118, 2
    %v123 = vperm.slane %v118, 3
    %128 = vmatpush.msra.mxu0 %v114
    %129 = vmatpush.msra.mxu0 %v110
    %130 = vmatpush.msra.mxu0 %v106
    %131 = vmatpush.msra.mxu0 %v102
    %132 = vmatpush.msra.mxu0 %v98
    %133 = vmatpush.msra.mxu0 %v94
    %134 = vmatpush.msra.mxu0 %v90
    %135 = vmatpush.msra.mxu0 %v86
    %136 = vmatpush.msra.mxu0 %v82
    %137 = vmatpush.msra.mxu0 %v78
    %138 = vmatpush.msra.mxu0 %v74
    %139 = vmatpush.msra.mxu0 %v70
    %140 = vmatpush.msra.mxu0 %v66
    %141 = vmatpush.msra.mxu0 %v62
    %142 = vmatpush.msra.mxu0 %v58
    %143 = vmatpush.msra.mxu0 %v54
    %144 = vmatmul.f32.gmra.mxu0 %v52
    %v145 = vpop.f32.mrf.mxu0
    %v146 = vadd.f32 %v120, %v145
    %147 = vmatmul.f32.gmra.mxu0 %v53
    %v148 = vpop.f32.mrf.mxu0
    %v149 = vadd.f32 %v120, %v148
    %150 = vdwg.mxu0
    %151 = vmatpush.msra.mxu0 %v115
    %152 = vmatpush.msra.mxu0 %v111
    %153 = vmatpush.msra.mxu0 %v107
    %154 = vmatpush.msra.mxu0 %v103
    %155 = vmatpush.msra.mxu0 %v99
    %156 = vmatpush.msra.mxu0 %v95
    %157 = vmatpush.msra.mxu0 %v91
    %158 = vmatpush.msra.mxu0 %v87
    %159 = vmatpush.msra.mxu0 %v83
    %160 = vmatpush.msra.mxu0 %v79
    %161 = vmatpush.msra.mxu0 %v75
    %162 = vmatpush.msra.mxu0 %v71
    %163 = vmatpush.msra.mxu0 %v67
    %164 = vmatpush.msra.mxu0 %v63
    %165 = vmatpush.msra.mxu0 %v59
    %166 = vmatpush.msra.mxu0 %v55
    %167 = vmatmul.f32.gmra.mxu0 %v52
    %v168 = vpop.f32.mrf.mxu0
    %v169 = vadd.f32 %v121, %v168
    %170 = vmatmul.f32.gmra.mxu0 %v53
    %v171 = vpop.f32.mrf.mxu0
    %v172 = vadd.f32 %v121, %v171
    %173 = vdwg.mxu0
    %174 = vmatpush.msra.mxu0 %v116
    %175 = vmatpush.msra.mxu0 %v112
    %176 = vmatpush.msra.mxu0 %v108
    %177 = vmatpush.msra.mxu0 %v104
    %178 = vmatpush.msra.mxu0 %v100
    %179 = vmatpush.msra.mxu0 %v96
    %180 = vmatpush.msra.mxu0 %v92
    %181 = vmatpush.msra.mxu0 %v88
    %182 = vmatpush.msra.mxu0 %v84
    %183 = vmatpush.msra.mxu0 %v80
    %184 = vmatpush.msra.mxu0 %v76
    %185 = vmatpush.msra.mxu0 %v72
    %186 = vmatpush.msra.mxu0 %v68
    %187 = vmatpush.msra.mxu0 %v64
    %188 = vmatpush.msra.mxu0 %v60
    %189 = vmatpush.msra.mxu0 %v56
    %190 = vmatmul.f32.gmra.mxu0 %v52
    %v191 = vpop.f32.mrf.mxu0
    %v192 = vadd.f32 %v122, %v191
    %193 = vmatmul.f32.gmra.mxu0 %v53
    %v194 = vpop.f32.mrf.mxu0
    %v195 = vadd.f32 %v122, %v194
    %196 = vdwg.mxu0
    %197 = vmatpush.msra.mxu0 %v117
    %198 = vmatpush.msra.mxu0 %v113
    %199 = vmatpush.msra.mxu0 %v109
    %200 = vmatpush.msra.mxu0 %v105
    %201 = vmatpush.msra.mxu0 %v101
    %202 = vmatpush.msra.mxu0 %v97
    %203 = vmatpush.msra.mxu0 %v93
    %204 = vmatpush.msra.mxu0 %v89
    %205 = vmatpush.msra.mxu0 %v85
    %206 = vmatpush.msra.mxu0 %v81
    %207 = vmatpush.msra.mxu0 %v77
    %208 = vmatpush.msra.mxu0 %v73
    %209 = vmatpush.msra.mxu0 %v69
    %210 = vmatpush.msra.mxu0 %v65
    %211 = vmatpush.msra.mxu0 %v61
    %212 = vmatpush.msra.mxu0 %v57
    %213 = vmatmul.f32.gmra.mxu0 %v52
    %v214 = vpop.f32.mrf.mxu0
    %v215 = vadd.f32 %v123, %v214
    %216 = vmatmul.f32.gmra.mxu0 %v53
    %v217 = vpop.f32.mrf.mxu0
    %v218 = vadd.f32 %v123, %v217
    %219 = vdwg.mxu0
    %v220 = vmul.f32 %v146, 0.5
    %v221 = vmul.f32 %v169, 0.5
    %v222 = vmul.f32 %v192, 0.5
    %v223 = vmul.f32 %v215, 0.5
    %v224 = vmul.f32 %v149, 0.5
    %v225 = vmul.f32 %v172, 0.5
    %v226 = vmul.f32 %v195, 0.5
    %v227 = vmul.f32 %v218, 0.5
    %v228 = vmul.f32 %v146, 0.70710677
    %v229 = vmul.f32 %v169, 0.70710677
    %v230 = vmul.f32 %v192, 0.70710677
    %v231 = vmul.f32 %v215, 0.70710677
    %v232 = vmul.f32 %v149, 0.70710677
    %v233 = vmul.f32 %v172, 0.70710677
    %v234 = vmul.f32 %v195, 0.70710677
    %v235 = vmul.f32 %v218, 0.70710677
    %v236 = vmul.f32 %v228, %v228
    %v237 = vmin.f32 16.0, %v236
    %v238 = vmul.f32 %v237, 2.1237322e-06
    %v239 = vadd.f32 %v238, 0.00028619796
    %v240 = vmul.f32 %v237, %v239
    %v241 = vadd.f32 %v240, 0.0036580483
    %v242 = vmul.f32 %v237, %v241
    %v243 = vadd.f32 %v242, 0.05243302
    %v244 = vmul.f32 %v237, %v243
    %v245 = vadd.f32 %v244, 0.18741608
    %v246 = vmul.f32 %v237, %v245
    %v247 = vadd.f32 %v246, 1.1283791
    %v248 = vmul.f32 %v228, %v247
    %v249 = vmul.f32 %v237, 3.8918573e-05
    %v250 = vadd.f32 %v249, 0.001143296
    %v251 = vmul.f32 %v237, %v250
    %v252 = vadd.f32 %v251, 0.014752088
    %v253 = vmul.f32 %v237, %v252
    %v254 = vadd.f32 %v253, 0.112945676
    %v255 = vmul.f32 %v237, %v254
    %v256 = vadd.f32 %v255, 0.4994258
    %v257 = vmul.f32 %v237, %v256
    %v258 = vadd.f32 %v257, 1.0
    %v259 = vrcp.pop %v258
    %v260 = vmul.f32 %v258, %v259
    %v261 = vsub.f32 1.0, %v260
    %v262 = vmul.f32 %v259, %v261
    %v263 = vadd.f32 %v259, %v262
    %vm264 = vweird.f32 %v258
    %vm265 = vweird.f32 %v259
    %vm266 = vmor %vm264, %vm265
    %v267 = vsel %vm266, %v259, %v263
    %v268 = vand.u32 2147483647, %v258
    %vm269 = vcmp.eq.f32.partialorder %v268, 8.507059e+37
    %v270 = vand.u32 %v258, 2147483648
    %v271 = vor.u32 1.1754944e-38, %v270
    %v272 = vsel %vm269, %v271, %v267
    %v273 = vmul.f32 %v248, %v272
    %v274 = vmin.f32 %v273, 1.0
    %v275 = vmax.f32 %v274, -1.0
    %v276 = vmul.f32 %v229, %v229
    %v277 = vmin.f32 16.0, %v276
    %v278 = vmul.f32 %v277, 2.1237322e-06
    %v279 = vadd.f32 %v278, 0.00028619796
    %v280 = vmul.f32 %v277, %v279
    %v281 = vadd.f32 %v280, 0.0036580483
    %v282 = vmul.f32 %v277, %v281
    %v283 = vadd.f32 %v282, 0.05243302
    %v284 = vmul.f32 %v277, %v283
    %v285 = vadd.f32 %v284, 0.18741608
    %v286 = vmul.f32 %v277, %v285
    %v287 = vadd.f32 %v286, 1.1283791
    %v288 = vmul.f32 %v229, %v287
    %v289 = vmul.f32 %v277, 3.8918573e-05
    %v290 = vadd.f32 %v289, 0.001143296
    %v291 = vmul.f32 %v277, %v290
    %v292 = vadd.f32 %v291, 0.014752088
    %v293 = vmul.f32 %v277, %v292
    %v294 = vadd.f32 %v293, 0.112945676
    %v295 = vmul.f32 %v277, %v294
    %v296 = vadd.f32 %v295, 0.4994258
    %v297 = vmul.f32 %v277, %v296
    %v298 = vadd.f32 %v297, 1.0
    %v299 = vrcp.pop %v298
    %v300 = vmul.f32 %v298, %v299
    %v301 = vsub.f32 1.0, %v300
    %v302 = vmul.f32 %v299, %v301
    %v303 = vadd.f32 %v299, %v302
    %vm304 = vweird.f32 %v298
    %vm305 = vweird.f32 %v299
    %vm306 = vmor %vm304, %vm305
    %v307 = vsel %vm306, %v299, %v303
    %v308 = vand.u32 2147483647, %v298
    %vm309 = vcmp.eq.f32.partialorder %v308, 8.507059e+37
    %v310 = vand.u32 %v298, 2147483648
    %v311 = vor.u32 1.1754944e-38, %v310
    %v312 = vsel %vm309, %v311, %v307
    %v313 = vmul.f32 %v288, %v312
    %v314 = vmin.f32 %v313, 1.0
    %v315 = vmax.f32 %v314, -1.0
    %v316 = vmul.f32 %v230, %v230
    %v317 = vmin.f32 16.0, %v316
    %v318 = vmul.f32 %v317, 2.1237322e-06
    %v319 = vadd.f32 %v318, 0.00028619796
    %v320 = vmul.f32 %v317, %v319
    %v321 = vadd.f32 %v320, 0.0036580483
    %v322 = vmul.f32 %v317, %v321
    %v323 = vadd.f32 %v322, 0.05243302
    %v324 = vmul.f32 %v317, %v323
    %v325 = vadd.f32 %v324, 0.18741608
    %v326 = vmul.f32 %v317, %v325
    %v327 = vadd.f32 %v326, 1.1283791
    %v328 = vmul.f32 %v230, %v327
    %v329 = vmul.f32 %v317, 3.8918573e-05
    %v330 = vadd.f32 %v329, 0.001143296
    %v331 = vmul.f32 %v317, %v330
    %v332 = vadd.f32 %v331, 0.014752088
    %v333 = vmul.f32 %v317, %v332
    %v334 = vadd.f32 %v333, 0.112945676
    %v335 = vmul.f32 %v317, %v334
    %v336 = vadd.f32 %v335, 0.4994258
    %v337 = vmul.f32 %v317, %v336
    %v338 = vadd.f32 %v337, 1.0
    %v339 = vrcp.pop %v338
    %v340 = vmul.f32 %v338, %v339
    %v341 = vsub.f32 1.0, %v340
    %v342 = vmul.f32 %v339, %v341
    %v343 = vadd.f32 %v339, %v342
    %vm344 = vweird.f32 %v338
    %vm345 = vweird.f32 %v339
    %vm346 = vmor %vm344, %vm345
    %v347 = vsel %vm346, %v339, %v343
    %v348 = vand.u32 2147483647, %v338
    %vm349 = vcmp.eq.f32.partialorder %v348, 8.507059e+37
    %v350 = vand.u32 %v338, 2147483648
    %v351 = vor.u32 1.1754944e-38, %v350
    %v352 = vsel %vm349, %v351, %v347
    %v353 = vmul.f32 %v328, %v352
    %v354 = vmin.f32 %v353, 1.0
    %v355 = vmax.f32 %v354, -1.0
    %v356 = vmul.f32 %v231, %v231
    %v357 = vmin.f32 16.0, %v356
    %v358 = vmul.f32 %v357, 2.1237322e-06
    %v359 = vadd.f32 %v358, 0.00028619796
    %v360 = vmul.f32 %v357, %v359
    %v361 = vadd.f32 %v360, 0.0036580483
    %v362 = vmul.f32 %v357, %v361
    %v363 = vadd.f32 %v362, 0.05243302
    %v364 = vmul.f32 %v357, %v363
    %v365 = vadd.f32 %v364, 0.18741608
    %v366 = vmul.f32 %v357, %v365
    %v367 = vadd.f32 %v366, 1.1283791
    %v368 = vmul.f32 %v231, %v367
    %v369 = vmul.f32 %v357, 3.8918573e-05
    %v370 = vadd.f32 %v369, 0.001143296
    %v371 = vmul.f32 %v357, %v370
    %v372 = vadd.f32 %v371, 0.014752088
    %v373 = vmul.f32 %v357, %v372
    %v374 = vadd.f32 %v373, 0.112945676
    %v375 = vmul.f32 %v357, %v374
    %v376 = vadd.f32 %v375, 0.4994258
    %v377 = vmul.f32 %v357, %v376
    %v378 = vadd.f32 %v377, 1.0
    %v379 = vrcp.pop %v378
    %v380 = vmul.f32 %v378, %v379
    %v381 = vsub.f32 1.0, %v380
    %v382 = vmul.f32 %v379, %v381
    %v383 = vadd.f32 %v379, %v382
    %vm384 = vweird.f32 %v378
    %vm385 = vweird.f32 %v379
    %vm386 = vmor %vm384, %vm385
    %v387 = vsel %vm386, %v379, %v383
    %v388 = vand.u32 2147483647, %v378
    %vm389 = vcmp.eq.f32.partialorder %v388, 8.507059e+37
    %v390 = vand.u32 %v378, 2147483648
    %v391 = vor.u32 1.1754944e-38, %v390
    %v392 = vsel %vm389, %v391, %v387
    %v393 = vmul.f32 %v368, %v392
    %v394 = vmin.f32 %v393, 1.0
    %v395 = vmax.f32 %v394, -1.0
    %v396 = vmul.f32 %v232, %v232
    %v397 = vmin.f32 16.0, %v396
    %v398 = vmul.f32 %v397, 2.1237322e-06
    %v399 = vadd.f32 %v398, 0.00028619796
    %v400 = vmul.f32 %v397, %v399
    %v401 = vadd.f32 %v400, 0.0036580483
    %v402 = vmul.f32 %v397, %v401
    %v403 = vadd.f32 %v402, 0.05243302
    %v404 = vmul.f32 %v397, %v403
    %v405 = vadd.f32 %v404, 0.18741608
    %v406 = vmul.f32 %v397, %v405
    %v407 = vadd.f32 %v406, 1.1283791
    %v408 = vmul.f32 %v232, %v407
    %v409 = vmul.f32 %v397, 3.8918573e-05
    %v410 = vadd.f32 %v409, 0.001143296
    %v411 = vmul.f32 %v397, %v410
    %v412 = vadd.f32 %v411, 0.014752088
    %v413 = vmul.f32 %v397, %v412
    %v414 = vadd.f32 %v413, 0.112945676
    %v415 = vmul.f32 %v397, %v414
    %v416 = vadd.f32 %v415, 0.4994258
    %v417 = vmul.f32 %v397, %v416
    %v418 = vadd.f32 %v417, 1.0
    %v419 = vrcp.pop %v418
    %v420 = vmul.f32 %v418, %v419
    %v421 = vsub.f32 1.0, %v420
    %v422 = vmul.f32 %v419, %v421
    %v423 = vadd.f32 %v419, %v422
    %vm424 = vweird.f32 %v418
    %vm425 = vweird.f32 %v419
    %vm426 = vmor %vm424, %vm425
    %v427 = vsel %vm426, %v419, %v423
    %v428 = vand.u32 2147483647, %v418
    %vm429 = vcmp.eq.f32.partialorder %v428, 8.507059e+37
    %v430 = vand.u32 %v418, 2147483648
    %v431 = vor.u32 1.1754944e-38, %v430
    %v432 = vsel %vm429, %v431, %v427
    %v433 = vmul.f32 %v408, %v432
    %v434 = vmin.f32 %v433, 1.0
    %v435 = vmax.f32 %v434, -1.0
    %v436 = vmul.f32 %v233, %v233
    %v437 = vmin.f32 16.0, %v436
    %v438 = vmul.f32 %v437, 2.1237322e-06
    %v439 = vadd.f32 %v438, 0.00028619796
    %v440 = vmul.f32 %v437, %v439
    %v441 = vadd.f32 %v440, 0.0036580483
    %v442 = vmul.f32 %v437, %v441
    %v443 = vadd.f32 %v442, 0.05243302
    %v444 = vmul.f32 %v437, %v443
    %v445 = vadd.f32 %v444, 0.18741608
    %v446 = vmul.f32 %v437, %v445
    %v447 = vadd.f32 %v446, 1.1283791
    %v448 = vmul.f32 %v233, %v447
    %v449 = vmul.f32 %v437, 3.8918573e-05
    %v450 = vadd.f32 %v449, 0.001143296
    %v451 = vmul.f32 %v437, %v450
    %v452 = vadd.f32 %v451, 0.014752088
    %v453 = vmul.f32 %v437, %v452
    %v454 = vadd.f32 %v453, 0.112945676
    %v455 = vmul.f32 %v437, %v454
    %v456 = vadd.f32 %v455, 0.4994258
    %v457 = vmul.f32 %v437, %v456
    %v458 = vadd.f32 %v457, 1.0
    %v459 = vrcp.pop %v458
    %v460 = vmul.f32 %v458, %v459
    %v461 = vsub.f32 1.0, %v460
    %v462 = vmul.f32 %v459, %v461
    %v463 = vadd.f32 %v459, %v462
    %vm464 = vweird.f32 %v458
    %vm465 = vweird.f32 %v459
    %vm466 = vmor %vm464, %vm465
    %v467 = vsel %vm466, %v459, %v463
    %v468 = vand.u32 2147483647, %v458
    %vm469 = vcmp.eq.f32.partialorder %v468, 8.507059e+37
    %v470 = vand.u32 %v458, 2147483648
    %v471 = vor.u32 1.1754944e-38, %v470
    %v472 = vsel %vm469, %v471, %v467
    %v473 = vmul.f32 %v448, %v472
    %v474 = vmin.f32 %v473, 1.0
    %v475 = vmax.f32 %v474, -1.0
    %v476 = vmul.f32 %v234, %v234
    %v477 = vmin.f32 16.0, %v476
    %v478 = vmul.f32 %v477, 2.1237322e-06
    %v479 = vadd.f32 %v478, 0.00028619796
    %v480 = vmul.f32 %v477, %v479
    %v481 = vadd.f32 %v480, 0.0036580483
    %v482 = vmul.f32 %v477, %v481
    %v483 = vadd.f32 %v482, 0.05243302
    %v484 = vmul.f32 %v477, %v483
    %v485 = vadd.f32 %v484, 0.18741608
    %v486 = vmul.f32 %v477, %v485
    %v487 = vadd.f32 %v486, 1.1283791
    %v488 = vmul.f32 %v234, %v487
    %v489 = vmul.f32 %v477, 3.8918573e-05
    %v490 = vadd.f32 %v489, 0.001143296
    %v491 = vmul.f32 %v477, %v490
    %v492 = vadd.f32 %v491, 0.014752088
    %v493 = vmul.f32 %v477, %v492
    %v494 = vadd.f32 %v493, 0.112945676
    %v495 = vmul.f32 %v477, %v494
    %v496 = vadd.f32 %v495, 0.4994258
    %v497 = vmul.f32 %v477, %v496
    %v498 = vadd.f32 %v497, 1.0
    %v499 = vrcp.pop %v498
    %v500 = vmul.f32 %v498, %v499
    %v501 = vsub.f32 1.0, %v500
    %v502 = vmul.f32 %v499, %v501
    %v503 = vadd.f32 %v499, %v502
    %vm504 = vweird.f32 %v498
    %vm505 = vweird.f32 %v499
    %vm506 = vmor %vm504, %vm505
    %v507 = vsel %vm506, %v499, %v503
    %v508 = vand.u32 2147483647, %v498
    %vm509 = vcmp.eq.f32.partialorder %v508, 8.507059e+37
    %v510 = vand.u32 %v498, 2147483648
    %v511 = vor.u32 1.1754944e-38, %v510
    %v512 = vsel %vm509, %v511, %v507
    %v513 = vmul.f32 %v488, %v512
    %v514 = vmin.f32 %v513, 1.0
    %v515 = vmax.f32 %v514, -1.0
    %v516 = vmul.f32 %v235, %v235
    %v517 = vmin.f32 16.0, %v516
    %v518 = vmul.f32 %v517, 2.1237322e-06
    %v519 = vadd.f32 %v518, 0.00028619796
    %v520 = vmul.f32 %v517, %v519
    %v521 = vadd.f32 %v520, 0.0036580483
    %v522 = vmul.f32 %v517, %v521
    %v523 = vadd.f32 %v522, 0.05243302
    %v524 = vmul.f32 %v517, %v523
    %v525 = vadd.f32 %v524, 0.18741608
    %v526 = vmul.f32 %v517, %v525
    %v527 = vadd.f32 %v526, 1.1283791
    %v528 = vmul.f32 %v235, %v527
    %v529 = vmul.f32 %v517, 3.8918573e-05
    %v530 = vadd.f32 %v529, 0.001143296
    %v531 = vmul.f32 %v517, %v530
    %v532 = vadd.f32 %v531, 0.014752088
    %v533 = vmul.f32 %v517, %v532
    %v534 = vadd.f32 %v533, 0.112945676
    %v535 = vmul.f32 %v517, %v534
    %v536 = vadd.f32 %v535, 0.4994258
    %v537 = vmul.f32 %v517, %v536
    %v538 = vadd.f32 %v537, 1.0
    %v539 = vrcp.pop %v538
    %v540 = vmul.f32 %v538, %v539
    %v541 = vsub.f32 1.0, %v540
    %v542 = vmul.f32 %v539, %v541
    %v543 = vadd.f32 %v539, %v542
    %vm544 = vweird.f32 %v538
    %vm545 = vweird.f32 %v539
    %vm546 = vmor %vm544, %vm545
    %v547 = vsel %vm546, %v539, %v543
    %v548 = vand.u32 2147483647, %v538
    %vm549 = vcmp.eq.f32.partialorder %v548, 8.507059e+37
    %v550 = vand.u32 %v538, 2147483648
    %v551 = vor.u32 1.1754944e-38, %v550
    %v552 = vsel %vm549, %v551, %v547
    %v553 = vmul.f32 %v528, %v552
    %v554 = vmin.f32 %v553, 1.0
    %v555 = vmax.f32 %v554, -1.0
    %v556 = vadd.f32 %v275, 1.0
    %v557 = vadd.f32 %v315, 1.0
    %v558 = vadd.f32 %v355, 1.0
    %v559 = vadd.f32 %v395, 1.0
    %v560 = vadd.f32 %v435, 1.0
    %v561 = vadd.f32 %v475, 1.0
    %v562 = vadd.f32 %v515, 1.0
    %v563 = vadd.f32 %v555, 1.0
    %v564 = vmul.f32 %v220, %v556
    %v565 = vmul.f32 %v221, %v557
    %v566 = vmul.f32 %v222, %v558
    %v567 = vmul.f32 %v223, %v559
    %v568 = vmul.f32 %v224, %v560
    %v569 = vmul.f32 %v225, %v561
    %v570 = vmul.f32 %v226, %v562
    %v571 = vmul.f32 %v227, %v563
    %v572 = vld [vmem:[#allocation4] sm:$0xff]
    %v573 = vld [vmem:[#allocation4 + $0x8] sm:$0xff]
    %v574 = vld [vmem:[#allocation4 + $0x10] sm:$0xff]
    %v575 = vld [vmem:[#allocation4 + $0x18] sm:$0xff]
    %v576 = vld [vmem:[#allocation4 + $0x20] sm:$0xff]
    %v577 = vld [vmem:[#allocation4 + $0x28] sm:$0xff]
    %v578 = vld [vmem:[#allocation4 + $0x30] sm:$0xff]
    %v579 = vld [vmem:[#allocation4 + $0x38] sm:$0xff]
    %v580 = vld [vmem:[#allocation4 + $0x40] sm:$0xff]
    %v581 = vld [vmem:[#allocation4 + $0x48] sm:$0xff]
    %v582 = vld [vmem:[#allocation4 + $0x50] sm:$0xff]
    %v583 = vld [vmem:[#allocation4 + $0x58] sm:$0xff]
    %v584 = vld [vmem:[#allocation4 + $0x60] sm:$0xff]
    %v585 = vld [vmem:[#allocation4 + $0x68] sm:$0xff]
    %v586 = vld [vmem:[#allocation4 + $0x70] sm:$0xff]
    %v587 = vld [vmem:[#allocation4 + $0x78] sm:$0xff]
    %v588 = vld [vmem:[#allocation4 + $0x80] sm:$0xff]
    %v589 = vld [vmem:[#allocation4 + $0x88] sm:$0xff]
    %v590 = vld [vmem:[#allocation4 + $0x90] sm:$0xff]
    %v591 = vld [vmem:[#allocation4 + $0x98] sm:$0xff]
    %v592 = vld [vmem:[#allocation4 + $0xa0] sm:$0xff]
    %v593 = vld [vmem:[#allocation4 + $0xa8] sm:$0xff]
    %v594 = vld [vmem:[#allocation4 + $0xb0] sm:$0xff]
    %v595 = vld [vmem:[#allocation4 + $0xb8] sm:$0xff]
    %v596 = vld [vmem:[#allocation4 + $0xc0] sm:$0xff]
    %v597 = vld [vmem:[#allocation4 + $0xc8] sm:$0xff]
    %v598 = vld [vmem:[#allocation4 + $0xd0] sm:$0xff]
    %v599 = vld [vmem:[#allocation4 + $0xd8] sm:$0xff]
    %v600 = vld [vmem:[#allocation4 + $0xe0] sm:$0xff]
    %v601 = vld [vmem:[#allocation4 + $0xe8] sm:$0xff]
    %v602 = vld [vmem:[#allocation4 + $0xf0] sm:$0xff]
    %v603 = vld [vmem:[#allocation4 + $0xf8] sm:$0xff]
    %v604 = vld [vmem:[#allocation4 + $0x100] sm:$0xff]
    %v605 = vld [vmem:[#allocation4 + $0x108] sm:$0xff]
    %v606 = vld [vmem:[#allocation4 + $0x110] sm:$0xff]
    %v607 = vld [vmem:[#allocation4 + $0x118] sm:$0xff]
    %v608 = vld [vmem:[#allocation4 + $0x120] sm:$0xff]
    %v609 = vld [vmem:[#allocation4 + $0x128] sm:$0xff]
    %v610 = vld [vmem:[#allocation4 + $0x130] sm:$0xff]
    %v611 = vld [vmem:[#allocation4 + $0x138] sm:$0xff]
    %v612 = vld [vmem:[#allocation4 + $0x140] sm:$0xff]
    %v613 = vld [vmem:[#allocation4 + $0x148] sm:$0xff]
    %v614 = vld [vmem:[#allocation4 + $0x150] sm:$0xff]
    %v615 = vld [vmem:[#allocation4 + $0x158] sm:$0xff]
    %v616 = vld [vmem:[#allocation4 + $0x160] sm:$0xff]
    %v617 = vld [vmem:[#allocation4 + $0x168] sm:$0xff]
    %v618 = vld [vmem:[#allocation4 + $0x170] sm:$0xff]
    %v619 = vld [vmem:[#allocation4 + $0x178] sm:$0xff]
    %v620 = vld [vmem:[#allocation4 + $0x180] sm:$0xff]
    %v621 = vld [vmem:[#allocation4 + $0x188] sm:$0xff]
    %v622 = vld [vmem:[#allocation4 + $0x190] sm:$0xff]
    %v623 = vld [vmem:[#allocation4 + $0x198] sm:$0xff]
    %v624 = vld [vmem:[#allocation4 + $0x1a0] sm:$0xff]
    %v625 = vld [vmem:[#allocation4 + $0x1a8] sm:$0xff]
    %v626 = vld [vmem:[#allocation4 + $0x1b0] sm:$0xff]
    %v627 = vld [vmem:[#allocation4 + $0x1b8] sm:$0xff]
    %v628 = vld [vmem:[#allocation4 + $0x1c0] sm:$0xff]
    %v629 = vld [vmem:[#allocation4 + $0x1c8] sm:$0xff]
    %v630 = vld [vmem:[#allocation4 + $0x1d0] sm:$0xff]
    %v631 = vld [vmem:[#allocation4 + $0x1d8] sm:$0xff]
    %v632 = vld [vmem:[#allocation4 + $0x1e0] sm:$0xff]
    %v633 = vld [vmem:[#allocation4 + $0x1e8] sm:$0xff]
    %v634 = vld [vmem:[#allocation4 + $0x1f0] sm:$0xff]
    %v635 = vld [vmem:[#allocation4 + $0x1f8] sm:$0xff]
    %v636 = vld [vmem:[%s4] sm:$0x1]
    %v638 = vperm.slane %v636, 0
    %640 = vmatpush.msra.mxu0 %v587
    %641 = vmatpush.msra.mxu0 %v586
    %642 = vmatpush.msra.mxu0 %v585
    %643 = vmatpush.msra.mxu0 %v584
    %644 = vmatpush.msra.mxu0 %v583
    %645 = vmatpush.msra.mxu0 %v582
    %646 = vmatpush.msra.mxu0 %v581
    %647 = vmatpush.msra.mxu0 %v580
    %648 = vmatpush.msra.mxu0 %v579
    %649 = vmatpush.msra.mxu0 %v578
    %650 = vmatpush.msra.mxu0 %v577
    %651 = vmatpush.msra.mxu0 %v576
    %652 = vmatpush.msra.mxu0 %v575
    %653 = vmatpush.msra.mxu0 %v574
    %654 = vmatpush.msra.mxu0 %v573
    %655 = vmatpush.msra.mxu0 %v572
    %656 = vmatmul.f32.gmra.mxu0 %v564
    %v657 = vpop.f32.mrf.mxu0
    %v658 = vadd.f32 %v638, %v657
    %659 = vmatmul.f32.gmra.mxu0 %v568
    %v660 = vpop.f32.mrf.mxu0
    %v661 = vadd.f32 %v638, %v660
    %662 = vdwg.mxu0
    %663 = vmatpush.msra.mxu0 %v603
    %664 = vmatpush.msra.mxu0 %v602
    %665 = vmatpush.msra.mxu0 %v601
    %666 = vmatpush.msra.mxu0 %v600
    %667 = vmatpush.msra.mxu0 %v599
    %668 = vmatpush.msra.mxu0 %v598
    %669 = vmatpush.msra.mxu0 %v597
    %670 = vmatpush.msra.mxu0 %v596
    %671 = vmatpush.msra.mxu0 %v595
    %672 = vmatpush.msra.mxu0 %v594
    %673 = vmatpush.msra.mxu0 %v593
    %674 = vmatpush.msra.mxu0 %v592
    %675 = vmatpush.msra.mxu0 %v591
    %676 = vmatpush.msra.mxu0 %v590
    %677 = vmatpush.msra.mxu0 %v589
    %678 = vmatpush.msra.mxu0 %v588
    %679 = vmatmul.f32.gmra.mxu0 %v565
    %v680 = vpop.f32.mrf.mxu0
    %v681 = vadd.f32 %v658, %v680
    %682 = vmatmul.f32.gmra.mxu0 %v569
    %v683 = vpop.f32.mrf.mxu0
    %v684 = vadd.f32 %v661, %v683
    %685 = vdwg.mxu0
    %686 = vmatpush.msra.mxu0 %v619
    %687 = vmatpush.msra.mxu0 %v618
    %688 = vmatpush.msra.mxu0 %v617
    %689 = vmatpush.msra.mxu0 %v616
    %690 = vmatpush.msra.mxu0 %v615
    %691 = vmatpush.msra.mxu0 %v614
    %692 = vmatpush.msra.mxu0 %v613
    %693 = vmatpush.msra.mxu0 %v612
    %694 = vmatpush.msra.mxu0 %v611
    %695 = vmatpush.msra.mxu0 %v610
    %696 = vmatpush.msra.mxu0 %v609
    %697 = vmatpush.msra.mxu0 %v608
    %698 = vmatpush.msra.mxu0 %v607
    %699 = vmatpush.msra.mxu0 %v606
    %700 = vmatpush.msra.mxu0 %v605
    %701 = vmatpush.msra.mxu0 %v604
    %702 = vmatmul.f32.gmra.mxu0 %v566
    %v703 = vpop.f32.mrf.mxu0
    %v704 = vadd.f32 %v681, %v703
    %705 = vmatmul.f32.gmra.mxu0 %v570
    %v706 = vpop.f32.mrf.mxu0
    %v707 = vadd.f32 %v684, %v706
    %708 = vdwg.mxu0
    %709 = vmatpush.msra.mxu0 %v635
    %710 = vmatpush.msra.mxu0 %v634
    %711 = vmatpush.msra.mxu0 %v633
    %712 = vmatpush.msra.mxu0 %v632
    %713 = vmatpush.msra.mxu0 %v631
    %714 = vmatpush.msra.mxu0 %v630
    %715 = vmatpush.msra.mxu0 %v629
    %716 = vmatpush.msra.mxu0 %v628
    %717 = vmatpush.msra.mxu0 %v627
    %718 = vmatpush.msra.mxu0 %v626
    %719 = vmatpush.msra.mxu0 %v625
    %720 = vmatpush.msra.mxu0 %v624
    %721 = vmatpush.msra.mxu0 %v623
    %722 = vmatpush.msra.mxu0 %v622
    %723 = vmatpush.msra.mxu0 %v621
    %724 = vmatpush.msra.mxu0 %v620
    %725 = vmatmul.f32.gmra.mxu0 %v567
    %v726 = vpop.f32.mrf.mxu0
    %v727 = vadd.f32 %v704, %v726
    %728 = vmatmul.f32.gmra.mxu0 %v571
    %v729 = vpop.f32.mrf.mxu0
    %v730 = vadd.f32 %v707, %v729
    %731 = vdwg.mxu0
    %732 = vst [vmem:[%s5] sm:$0xff] %v727
    %733 = vst [vmem:[%s5 + $0x8] sm:$0xff] %v730
    // Predicated region
    $region30: #{_lambda_.1} parent=1 // pred_check
      _
    $region31: #{_lambda_.1} parent=1 // pred_check_branch
      %735 = sbr.rel (0) target = $region33
    $region32: #{_lambda_.1} parent=1 // pred_region
      _
    $region33: #{_lambda_.1} parent=1 // pred_fallthru
      _
    // Predicated region
    $region34: #{_lambda_.1} parent=1 // pred_check
      _
    $region35: #{_lambda_.1} parent=1 // pred_check_branch
      %737 = sbr.rel (0) target = $region37
    $region36: #{_lambda_.1} parent=1 // pred_region
      _
    $region37: #{_lambda_.1} parent=1 // pred_fallthru
      _
    %738 = vsyncpa [#allocation3], 1
    %739 = vsyncpa [#allocation5], 1

</llo_original>
